<compile_context>
chip_gen: v5e
topology: v5e:2x2
jax: 0.10.0
libtpu: 0.0.40
codegen_flags: <defaults>
</compile_context>

<pallas_src>
import functools

import jax
import jax.numpy as jnp
from jax.experimental import pallas as pl
from jax.experimental.pallas import tpu as pltpu


def _log_deltas_to_boxes_kernel(deltas_ref, anchors_ref, boxes_ref, *, batch, dim):
    """Refs are 2D (batch * 2*dim, tile_n) slabs in VMEM (lane axis dense)."""
    C = 2 * dim
    out_dtype = boxes_ref.dtype
    # `batch` is tiny and static -> unrolled Python loop; all slices are static.
    for b in range(batch):
        r0 = b * C
        a_pos = anchors_ref[r0:r0 + dim, :].astype(jnp.float32)
        a_size = anchors_ref[r0 + dim:r0 + C, :].astype(jnp.float32)
        d_pos = deltas_ref[r0:r0 + dim, :].astype(jnp.float32)
        d_size = deltas_ref[r0 + dim:r0 + C, :].astype(jnp.float32)

        # Write each half directly into the output ref: no concatenate copy.
        boxes_ref[r0:r0 + dim, :] = (d_pos * a_size + a_pos).astype(out_dtype)
        boxes_ref[r0 + dim:r0 + C, :] = (jnp.exp(d_size) * a_size).astype(out_dtype)


def log_deltas_to_boxes(deltas, anchors, *, max_block_bytes=512 * 1024):
    """deltas, anchors: (B, 2*dim, N) float arrays. Returns boxes of same shape."""
    assert deltas.shape == anchors.shape
    B, C, N = deltas.shape
    assert C % 2 == 0, "channel axis must be 2*dim"
    dim = C // 2
    rows = B * C
    itemsize = jnp.dtype(deltas.dtype).itemsize

    # Lane tile: as many 128-lane columns as fit the per-block byte budget.
    # 3 arrays x 2 pipeline buffers x block_bytes stays well inside scoped VMEM
    # on every TPU generation (v5e/v6e/v7x).
    lanes_budget = max(128, (max_block_bytes // max(1, rows * itemsize)) // 128 * 128)
    if N <= lanes_budget:
        tile_n = N          # single block; a full-extent block dim is always legal
    else:
        tile_n = lanes_budget
    num_tiles = pl.cdiv(N, tile_n)

    # Free reshape: (B, C, N) is contiguous, so (B*C, N) is a reinterpret.
    deltas2 = deltas.reshape(rows, N)
    anchors2 = anchors.reshape(rows, N)

    spec = pl.BlockSpec((rows, tile_n), lambda i: (0, i))
    kernel = functools.partial(_log_deltas_to_boxes_kernel, batch=B, dim=dim)

    boxes2 = pl.pallas_call(
        kernel,
        out_shape=jax.ShapeDtypeStruct((rows, N), deltas.dtype),
        grid_spec=pltpu.PrefetchScalarGridSpec(
            num_scalar_prefetch=0,
            grid=(num_tiles,),
            in_specs=[spec, spec],
            out_specs=spec,
        ),
        compiler_params=pltpu.CompilerParams(
            dimension_semantics=("parallel",),   # shards across v7x's 2 TCs
            vmem_limit_bytes=32 * 1024 * 1024,
        ),
        # NOTE: input_output_aliases={0: 0} could reuse the deltas buffer for the
        # output (saves an HBM allocation, not bandwidth); left off to keep the
        # wrapper side-effect free for callers that still need `deltas`.
    )(deltas2, anchors2)

    return boxes2.reshape(B, C, N)


def _reference(deltas, anchors):
    dim = anchors.shape[1] // 2
    anchor_pos = anchors[:, :dim]
    anchor_size = anchors[:, dim:]
    delta_pos = deltas[:, :dim]
    delta_size = deltas[:, dim:]
    pos = delta_pos * anchor_size + anchor_pos
    size = jnp.exp(delta_size) * anchor_size
    return jnp.concatenate([pos, size], axis=1)


if __name__ == "__main__":
    # Small, deterministic example: batch=2, dim=2 (4 channels = [cx, cy, w, h]),
    # 16x16 feature map flattened to N = 256 anchor positions.
    key = jax.random.PRNGKey(0)
    k1, k2 = jax.random.split(key)
    B, dim, H, W = 2, 2, 16, 16
    N = H * W

    deltas = 0.1 * jax.random.normal(k1, (B, 2 * dim, N), dtype=jnp.float32)
    # anchors: positions anywhere, sizes strictly positive.
    anchor_pos = 8.0 * jax.random.uniform(k2, (B, dim, N), dtype=jnp.float32)
    anchor_size = 1.0 + 4.0 * jax.random.uniform(
        jax.random.fold_in(k2, 1), (B, dim, N), dtype=jnp.float32
    )
    anchors = jnp.concatenate([anchor_pos, anchor_size], axis=1)

    ref = _reference(deltas, anchors)

    boxes = log_deltas_to_boxes(deltas, anchors)
    boxes = jax.block_until_ready(boxes)

    assert boxes.shape == ref.shape
    assert jnp.allclose(boxes, ref, rtol=1e-5, atol=1e-5)

    print("KERNEL_OK")
</pallas_src>

<mosaic_0001>
module attributes {stable_mosaic.version = 11 : i64} {
  func.func @_log_deltas_to_boxes_kernel(%arg0: i32, %arg1: memref<8x256xf32, #tpu.memory_space<vmem>>, %arg2: memref<8x256xf32, #tpu.memory_space<vmem>>, %arg3: memref<8x256xf32, #tpu.memory_space<vmem>>) attributes {dimension_semantics = [#tpu.dimension_semantics<parallel>], iteration_bounds = array<i64: 1>, scalar_prefetch = 0 : i64, scratch_operands = 0 : i64, tpu.core_type = #tpu.core_type<tc>, window_params = [{transform_indices = @transform_0, window_bounds = array<i64: 8, 256>}, {transform_indices = @transform_1, window_bounds = array<i64: 8, 256>}, {transform_indices = @transform_2, window_bounds = array<i64: 8, 256>}]} {
    %c0 = arith.constant 0 : index
    %c0_0 = arith.constant 0 : index
    %0 = vector.load %arg2[%c0, %c0_0] : memref<8x256xf32, #tpu.memory_space<vmem>>, vector<2x256xf32>
    %c2 = arith.constant 2 : index
    %c0_1 = arith.constant 0 : index
    %1 = vector.load %arg2[%c2, %c0_1] : memref<8x256xf32, #tpu.memory_space<vmem>>, vector<2x256xf32>
    %c0_2 = arith.constant 0 : index
    %c0_3 = arith.constant 0 : index
    %2 = vector.load %arg1[%c0_2, %c0_3] : memref<8x256xf32, #tpu.memory_space<vmem>>, vector<2x256xf32>
    %c2_4 = arith.constant 2 : index
    %c0_5 = arith.constant 0 : index
    %3 = vector.load %arg1[%c2_4, %c0_5] : memref<8x256xf32, #tpu.memory_space<vmem>>, vector<2x256xf32>
    %4 = arith.mulf %2, %1 : vector<2x256xf32>
    %5 = arith.addf %4, %0 : vector<2x256xf32>
    %c0_6 = arith.constant 0 : index
    %c0_7 = arith.constant 0 : index
    %6 = vector.load %arg3[%c0_6, %c0_7] : memref<8x256xf32, #tpu.memory_space<vmem>>, vector<2x256xf32>
    tpu.vector_store %arg3[%c0_6, %c0_7], %5 {strides = array<i32>} : memref<8x256xf32, #tpu.memory_space<vmem>>, vector<2x256xf32>,
    %7 = math.exp %3 : vector<2x256xf32>
    %8 = arith.mulf %7, %1 : vector<2x256xf32>
    %c2_8 = arith.constant 2 : index
    %c0_9 = arith.constant 0 : index
    %9 = vector.load %arg3[%c2_8, %c0_9] : memref<8x256xf32, #tpu.memory_space<vmem>>, vector<2x256xf32>
    tpu.vector_store %arg3[%c2_8, %c0_9], %8 {strides = array<i32>} : memref<8x256xf32, #tpu.memory_space<vmem>>, vector<2x256xf32>,
    %c4 = arith.constant 4 : index
    %c0_10 = arith.constant 0 : index
    %10 = vector.load %arg2[%c4, %c0_10] : memref<8x256xf32, #tpu.memory_space<vmem>>, vector<2x256xf32>
    %c6 = arith.constant 6 : index
    %c0_11 = arith.constant 0 : index
    %11 = vector.load %arg2[%c6, %c0_11] : memref<8x256xf32, #tpu.memory_space<vmem>>, vector<2x256xf32>
    %c4_12 = arith.constant 4 : index
    %c0_13 = arith.constant 0 : index
    %12 = vector.load %arg1[%c4_12, %c0_13] : memref<8x256xf32, #tpu.memory_space<vmem>>, vector<2x256xf32>
    %c6_14 = arith.constant 6 : index
    %c0_15 = arith.constant 0 : index
    %13 = vector.load %arg1[%c6_14, %c0_15] : memref<8x256xf32, #tpu.memory_space<vmem>>, vector<2x256xf32>
    %14 = arith.mulf %12, %11 : vector<2x256xf32>
    %15 = arith.addf %14, %10 : vector<2x256xf32>
    %c4_16 = arith.constant 4 : index
    %c0_17 = arith.constant 0 : index
    %16 = vector.load %arg3[%c4_16, %c0_17] : memref<8x256xf32, #tpu.memory_space<vmem>>, vector<2x256xf32>
    tpu.vector_store %arg3[%c4_16, %c0_17], %15 {strides = array<i32>} : memref<8x256xf32, #tpu.memory_space<vmem>>, vector<2x256xf32>,
    %17 = math.exp %13 : vector<2x256xf32>
    %18 = arith.mulf %17, %11 : vector<2x256xf32>
    %c6_18 = arith.constant 6 : index
    %c0_19 = arith.constant 0 : index
    %19 = vector.load %arg3[%c6_18, %c0_19] : memref<8x256xf32, #tpu.memory_space<vmem>>, vector<2x256xf32>
    tpu.vector_store %arg3[%c6_18, %c0_19], %18 {strides = array<i32>} : memref<8x256xf32, #tpu.memory_space<vmem>>, vector<2x256xf32>,
    return
  }
  func.func @transform_0(%arg0: i32) -> (i32, i32) {
    %c0_i32 = arith.constant 0 : i32
    %c0_i32_0 = arith.constant 0 : i32
    return %c0_i32, %arg0 : i32, i32
  }
  func.func @transform_1(%arg0: i32) -> (i32, i32) {
    %c0_i32 = arith.constant 0 : i32
    %c0_i32_0 = arith.constant 0 : i32
    return %c0_i32, %arg0 : i32, i32
  }
  func.func @transform_2(%arg0: i32) -> (i32, i32) {
    %c0_i32 = arith.constant 0 : i32
    %c0_i32_0 = arith.constant 0 : i32
    return %c0_i32, %arg0 : i32, i32
  }
}

</mosaic_0001>

<llo_original>
// kernel: tpu_custom_call.1
$region0: #{tpu_custom_call.1}
  #allocation0 [shape = 'u32[]', space=smem, size = 0x4, offset = 0x4, fixed_abs, tag = 'smem constant byte address 0x4 - core index']
  #allocation1 [shape = 'u32[72,128]{1,0:T(1,128)}', space=vmem, size = 0x9000, scoped, tag = 'internal scratch']
  %s0 = inlined_call_operand.hbm [shape: f32[8,256], index: 0, kind: input, shape index: {}]
  %s1 = inlined_call_operand.hbm [shape: f32[8,256], index: 1, kind: input, shape index: {}]
  %s2 = inlined_call_operand.hbm [shape: f32[8,256], index: 2, kind: output, shape index: {}]
  %s3 = sld [smem:[#allocation0]]
  $region26: #{tpu_custom_call.1} parent=0
    _
  %s5 = ssub.s32 1, %s3
  %s6 = scalar_select 0, %s5, %s3
  $region1: #{tpu_custom_call.1} parent=0
    #allocation2 [shape = 'u8[8192]{0}', space=vmem, size = 0x2000, scoped, tag = 'input window, operand 0, single buffered']
    #allocation3 [shape = 's32[1]{0}', space=sflag, size = 0x4, scoped, tag = 'scoped memory for tpu_custom_call.1']
    #allocation4 [shape = 's32[1]{0}', space=sflag, size = 0x4, scoped, tag = 'scoped memory for tpu_custom_call.1']
    #allocation5 [shape = 'u8[8192]{0}', space=vmem, size = 0x2000, scoped, tag = 'input window, operand 1, single buffered']
    #allocation6 [shape = 's32[1]{0}', space=sflag, size = 0x4, scoped, tag = 'scoped memory for tpu_custom_call.1']
    #allocation7 [shape = 'u8[8192]{0}', space=vmem, size = 0x2000, scoped, tag = 'output window, operand 0, single buffered']
    %7 = vsyncpa [#allocation3], 0
    %8 = vsyncpa [#allocation6], 0
    %9 = vsyncpa [#allocation4], 0
    // Predicated region
    $region2: #{tpu_custom_call.1} parent=1 // pred_check
      _
    $region3: #{tpu_custom_call.1} parent=1 // pred_check_branch
      %11 = sbr.rel (0) target = $region5
    $region4: #{tpu_custom_call.1} parent=1 // pred_region
      %13 = vsyncadd [#allocation3], 0
      %s15 = sshll.u32 %s0, 4
      %s16 = int_to_ptr.hbm [resolvable:$true] %s15
      %s17 = sshll.u32 [#allocation2], 4
      %s18 = int_to_ptr.vmem [resolvable:$true] %s17
      %20 = dma.hbm_to_vmem [thread:$0]  %s16, 256, %s18, [#allocation3]
    $region5: #{tpu_custom_call.1} parent=1 // pred_fallthru
      _
    // Predicated region
    $region6: #{tpu_custom_call.1} parent=1 // pred_check
      _
    $region7: #{tpu_custom_call.1} parent=1 // pred_check_branch
      %22 = sbr.rel (0) target = $region9
    $region8: #{tpu_custom_call.1} parent=1 // pred_region
      %24 = vsyncadd [#allocation6], 0
      %s26 = sshll.u32 %s1, 4
      %s27 = int_to_ptr.hbm [resolvable:$true] %s26
      %s28 = sshll.u32 [#allocation5], 4
      %s29 = int_to_ptr.vmem [resolvable:$true] %s28
      %31 = dma.hbm_to_vmem [thread:$0]  %s27, 256, %s29, [#allocation6]
    $region9: #{tpu_custom_call.1} parent=1 // pred_fallthru
      _
    // Predicated region
    $region10: #{tpu_custom_call.1} parent=1 // pred_check
      _
    $region11: #{tpu_custom_call.1} parent=1 // pred_check_branch
      %33 = sbr.rel (0) target = $region13
    $region12: #{tpu_custom_call.1} parent=1 // pred_region
      %35 = dma.done [#allocation3], 256
    $region13: #{tpu_custom_call.1} parent=1 // pred_fallthru
      _
    // Predicated region
    $region14: #{tpu_custom_call.1} parent=1 // pred_check
      _
    $region15: #{tpu_custom_call.1} parent=1 // pred_check_branch
      %37 = sbr.rel (0) target = $region17
    $region16: #{tpu_custom_call.1} parent=1 // pred_region
      %39 = dma.done [#allocation6], 256
    $region17: #{tpu_custom_call.1} parent=1 // pred_fallthru
      _
    %v40 = vld [vmem:[#allocation5] sm:$0x3]
    %v41 = vld [vmem:[#allocation5 + $0x8] sm:$0x3]
    %v42 = vld [vmem:[#allocation5] sm:$0xc]
    %v43 = vld [vmem:[#allocation5 + $0x8] sm:$0xc]
    %v44 = vld [vmem:[#allocation2] sm:$0x3]
    %v45 = vld [vmem:[#allocation2 + $0x8] sm:$0x3]
    %v46 = vld [vmem:[#allocation2] sm:$0xc]
    %v47 = vld [vmem:[#allocation2 + $0x8] sm:$0xc]
    %v50 = vrot.slane %v42, 2
    %v51 = vrot.slane %v43, 2
    %v54 = vmul.f32 %v44, %v50
    %v55 = vmul.f32 %v45, %v51
    %v56 = vadd.f32 %v54, %v40
    %v57 = vadd.f32 %v55, %v41
    %58 = vst [vmem:[#allocation7] sm:$0x3] %v56
    %59 = vst [vmem:[#allocation7 + $0x8] sm:$0x3] %v57
    %v60 = vmul.f32 %v46, 1.442695
    %v61 = vpow.pop %v60
    %v62 = vmul.f32 %v47, 1.442695
    %v63 = vpow.pop %v62
    %v64 = vmul.f32 %v61, %v42
    %v65 = vmul.f32 %v63, %v43
    %66 = vst [vmem:[#allocation7] sm:$0xc] %v64
    %67 = vst [vmem:[#allocation7 + $0x8] sm:$0xc] %v65
    %v68 = vld [vmem:[#allocation5] sm:$0x30]
    %v69 = vld [vmem:[#allocation5 + $0x8] sm:$0x30]
    %v70 = vld [vmem:[#allocation5] sm:$0xc0]
    %v71 = vld [vmem:[#allocation5 + $0x8] sm:$0xc0]
    %v72 = vld [vmem:[#allocation2] sm:$0x30]
    %v73 = vld [vmem:[#allocation2 + $0x8] sm:$0x30]
    %v74 = vld [vmem:[#allocation2] sm:$0xc0]
    %v75 = vld [vmem:[#allocation2 + $0x8] sm:$0xc0]
    %v78 = vrot.slane %v70, 2
    %v79 = vrot.slane %v71, 2
    %v82 = vmul.f32 %v72, %v78
    %v83 = vmul.f32 %v73, %v79
    %v84 = vadd.f32 %v82, %v68
    %v85 = vadd.f32 %v83, %v69
    %86 = vst [vmem:[#allocation7] sm:$0x30] %v84
    %87 = vst [vmem:[#allocation7 + $0x8] sm:$0x30] %v85
    %v88 = vmul.f32 %v74, 1.442695
    %v89 = vpow.pop %v88
    %v90 = vmul.f32 %v75, 1.442695
    %v91 = vpow.pop %v90
    %v92 = vmul.f32 %v89, %v70
    %v93 = vmul.f32 %v91, %v71
    %94 = vst [vmem:[#allocation7] sm:$0xc0] %v92
    %95 = vst [vmem:[#allocation7 + $0x8] sm:$0xc0] %v93
    // Predicated region
    $region18: #{tpu_custom_call.1} parent=1 // pred_check
      _
    $region19: #{tpu_custom_call.1} parent=1 // pred_check_branch
      %97 = sbr.rel (0) target = $region21
    $region20: #{tpu_custom_call.1} parent=1 // pred_region
      %99 = vsyncadd [#allocation4], 0
      %s101 = sshll.u32 [#allocation7], 4
      %s102 = int_to_ptr.vmem [resolvable:$true] %s101
      %s103 = sshll.u32 %s2, 4
      %s104 = int_to_ptr.hbm [resolvable:$true] %s103
      %106 = dma.vmem_to_hbm [thread:$0]  %s102, 256, %s104, [#allocation4]
    $region21: #{tpu_custom_call.1} parent=1 // pred_fallthru
      _
    // Predicated region
    $region22: #{tpu_custom_call.1} parent=1 // pred_check
      _
    $region23: #{tpu_custom_call.1} parent=1 // pred_check_branch
      %108 = sbr.rel (0) target = $region25
    $region24: #{tpu_custom_call.1} parent=1 // pred_region
      %110 = dma.done [#allocation4], 256
    $region25: #{tpu_custom_call.1} parent=1 // pred_fallthru
      _
    %111 = vsyncpa [#allocation3], 1
    %112 = vsyncpa [#allocation6], 1
    %113 = vsyncpa [#allocation4], 1

</llo_original>
